<compile_context>
chip_gen: v7x
topology: tpu7x:2x2x1
jax: 0.10.0
libtpu: 0.0.40
codegen_flags: <defaults>
</compile_context>

<pallas_src>
import functools

import jax
import jax.numpy as jnp
from jax.experimental import pallas as pl
from jax.experimental.pallas import tpu as pltpu

HIDDEN = 30     # fc1 output features (from the PyTorch module)
H_PAD = 32      # hidden padded to a sublane multiple (8), not 128
LANE = 128      # TPU lane width: batch tiles are multiples of this


def _round_up(n, m):
    return ((n + m - 1) // m) * m


def _cdiv(a, b):
    return (a + b - 1) // b


def _tensorcores_per_chip():
    """2 on v7x (2 TCs/chip -> give each a batch tile), else 1 (v5e/v6e)."""
    try:
        kind = getattr(jax.devices()[0], "device_kind", "").lower()
    except Exception:
        kind = ""
    return 2 if "v7" in kind else 1


# ----------------------------------------------------------------------------
# Kernel: one batch tile (on the lane axis) through both linear layers.
#   xt : (K, TB)        state tile, batch on lanes
#   w1t: (H_PAD, K)     fc1 weight (transposed, hidden zero-padded to 32)
#   b1t: (H_PAD, 1)
#   w2t: (A_PAD, H_PAD) fc2 weight (transposed, actions zero-padded to 8)
#   b2t: (A_PAD, 1)
#   ot : (A_PAD, TB)    q-values transposed; only A_PAD*4 bytes/row written
# ----------------------------------------------------------------------------
def _mlp_kernel(xt_ref, w1t_ref, b1t_ref, w2t_ref, b2t_ref, ot_ref):
    h = jnp.dot(w1t_ref[...], xt_ref[...], preferred_element_type=jnp.float32)
    h = jnp.maximum(h + b1t_ref[...], 0.0)          # padded hidden rows stay 0
    q = jnp.dot(w2t_ref[...], h, preferred_element_type=jnp.float32)
    ot_ref[...] = (q + b2t_ref[...]).astype(ot_ref.dtype)  # padded action rows stay 0


# ----------------------------------------------------------------------------
# Host-side parameter transpose + zero-padding (done once, off the hot path).
# ----------------------------------------------------------------------------
def pad_params(w1, b1, w2, b2):
    """w1: (input_size, 30), b1: (30,)/(1,30); w2: (30, nb_action), b2: (nb_action,)/(1,nb_action).
    Returns transposed, zero-padded params:
      w1t: (H_PAD, input_size), b1t: (H_PAD, 1), w2t: (A_PAD, H_PAD), b2t: (A_PAD, 1)."""
    input_size, hidden = w1.shape
    nb_action = w2.shape[1]
    assert hidden == HIDDEN and HIDDEN <= H_PAD, "hidden dim must be <= H_PAD"
    a_pad = _round_up(nb_action, 8)

    w1t = jnp.zeros((H_PAD, input_size), jnp.float32).at[:hidden, :].set(
        jnp.asarray(w1, jnp.float32).T)
    b1t = jnp.zeros((H_PAD, 1), jnp.float32).at[:hidden, 0].set(
        jnp.reshape(jnp.asarray(b1, jnp.float32), (hidden,)))
    w2t = jnp.zeros((a_pad, H_PAD), jnp.float32).at[:nb_action, :hidden].set(
        jnp.asarray(w2, jnp.float32).T)
    b2t = jnp.zeros((a_pad, 1), jnp.float32).at[:nb_action, 0].set(
        jnp.reshape(jnp.asarray(b2, jnp.float32), (nb_action,)))
    return w1t, b1t, w2t, b2t


# ----------------------------------------------------------------------------
# Pallas forward pass (replay-batch / training path).
# ----------------------------------------------------------------------------
@functools.partial(jax.jit, static_argnames=("nb_action", "tb_cap"))
def network_forward_pallas(state, w1t, b1t, w2t, b2t, *, nb_action, tb_cap=8192):
    """state: (B, input_size) f32; params from pad_params(). Returns (B, nb_action)."""
    B, K = state.shape
    a_pad = w2t.shape[0]

    # Balanced, generation-aware batch tiling:
    #   * >=2 tiles on v7x so both TensorCores get a "parallel" tile,
    #   * 1 maximal tile on v5e/v6e (grid is a serial loop -> fewer ~0.35us steps),
    #   * tiles are multiples of 128 lanes -> unmasked lane-dense output store;
    #     padding waste is <=127 rows of ~(K + a_pad)*4 bytes -> negligible,
    #   * tb_cap bounds the double-buffered tile footprint well under v5e's
    #     16 MiB default scoped-VMEM limit.
    n_tiles = max(_tensorcores_per_chip(), _cdiv(B, tb_cap))
    tb = _round_up(_cdiv(B, n_tiles), LANE)
    grid_n = _cdiv(B, tb)
    padded_B = grid_n * tb

    # Batch onto the lane axis; pad+transpose fuse into one small XLA copy
    # (~(K)*4 bytes per row, vs. the 512 B/row output writeback this removes).
    xt = jnp.pad(jnp.asarray(state, jnp.float32).T, ((0, 0), (0, padded_B - B)))

    qt = pl.pallas_call(
        _mlp_kernel,
        out_shape=jax.ShapeDtypeStruct((a_pad, padded_B), jnp.float32),
        grid=(grid_n,),
        in_specs=[
            # state streams per batch tile
            pl.BlockSpec((K, tb), lambda i: (0, i)),
            # weights / biases: constant index_map -> DMA'd once, stay resident
            pl.BlockSpec((H_PAD, K), lambda i: (0, 0)),
            pl.BlockSpec((H_PAD, 1), lambda i: (0, 0)),
            pl.BlockSpec((a_pad, H_PAD), lambda i: (0, 0)),
            pl.BlockSpec((a_pad, 1), lambda i: (0, 0)),
        ],
        out_specs=pl.BlockSpec((a_pad, tb), lambda i: (0, i)),
        compiler_params=pltpu.CompilerParams(
            dimension_semantics=("parallel",)),   # shard batch tiles across TCs (v7x)
    )(xt, w1t, b1t, w2t, b2t)

    # (a_pad, padded_B) -> (B, nb_action): tiny (<=8 x B) slice + transpose.
    return qt[:nb_action, :B].T


# ----------------------------------------------------------------------------
# Plain-jnp path: for this 5->30->3 MLP the XLA-fused path wins at small/medium
# batches since Pallas launch + DMA setup dominate.
# ----------------------------------------------------------------------------
@functools.partial(jax.jit, static_argnames=("nb_action",))
def network_forward_jnp(state, w1t, b1t, w2t, b2t, *, nb_action):
    h = jnp.maximum(state @ w1t.T + b1t[:, 0], 0.0)
    q = h @ w2t.T + b2t[:, 0]
    return q[:, :nb_action]


def network_forward(state, w1t, b1t, w2t, b2t, *, nb_action, tb_cap=8192,
                    min_pallas_batch=256):
    """Dispatcher: small batches -> jnp, large replay batches -> Pallas kernel.
    TODO(synk): benchmark the crossover per TPU generation and tune min_pallas_batch."""
    if state.shape[0] < min_pallas_batch:
        return network_forward_jnp(state, w1t, b1t, w2t, b2t, nb_action=nb_action)
    return network_forward_pallas(state, w1t, b1t, w2t, b2t,
                                  nb_action=nb_action, tb_cap=tb_cap)


def init_params(key, input_size, nb_action, hidden=HIDDEN):
    """Mirror torch.nn.Linear's default U(-1/sqrt(fan_in), 1/sqrt(fan_in)) init."""
    k1, k2, k3, k4 = jax.random.split(key, 4)
    lim1 = 1.0 / jnp.sqrt(jnp.float32(input_size))
    lim2 = 1.0 / jnp.sqrt(jnp.float32(hidden))
    w1 = jax.random.uniform(k1, (input_size, hidden), jnp.float32, -lim1, lim1)
    b1 = jax.random.uniform(k2, (1, hidden), jnp.float32, -lim1, lim1)
    w2 = jax.random.uniform(k3, (hidden, nb_action), jnp.float32, -lim2, lim2)
    b2 = jax.random.uniform(k4, (1, nb_action), jnp.float32, -lim2, lim2)
    return w1, b1, w2, b2


if __name__ == "__main__":
    # Self-driving-car brain: input_size=5 (3 sensors + 2 orientation), nb_action=3.
    input_size, nb_action = 5, 3

    key = jax.random.PRNGKey(0)
    k_params, k_s1, k_s2, k_s3 = jax.random.split(key, 4)
    w1, b1, w2, b2 = init_params(k_params, input_size, nb_action)
    w1t, b1t, w2t, b2t = pad_params(w1, b1, w2, b2)

    def reference(state):
        return jnp.maximum(state @ w1 + b1, 0.0) @ w2 + b2

    # --- small batch (single padded tile) ------------------------------------
    state_small = jax.random.normal(k_s1, (2, input_size), jnp.float32)
    q_small = jax.block_until_ready(
        network_forward_pallas(state_small, w1t, b1t, w2t, b2t, nb_action=nb_action))
    assert q_small.shape == (2, nb_action)
    assert jnp.allclose(q_small, reference(state_small), atol=1e-5), \
        "mismatch vs reference (batch=2)"

    # --- replay-style batch ---------------------------------------------------
    state_big = jax.random.normal(k_s2, (256, input_size), jnp.float32)
    q_big = jax.block_until_ready(
        network_forward_pallas(state_big, w1t, b1t, w2t, b2t, nb_action=nb_action))
    assert q_big.shape == (256, nb_action)
    assert jnp.allclose(q_big, reference(state_big), atol=1e-5), \
        "mismatch vs reference (batch=256)"

    # --- odd batch, forced multi-tile grid (balanced-tiling / padding math) ---
    state_odd = jax.random.normal(k_s3, (600, input_size), jnp.float32)
    q_odd = jax.block_until_ready(
        network_forward_pallas(state_odd, w1t, b1t, w2t, b2t,
                               nb_action=nb_action, tb_cap=256))
    assert q_odd.shape == (600, nb_action)
    assert jnp.allclose(q_odd, reference(state_odd), atol=1e-5), \
        "mismatch vs reference (batch=600, multi-tile)"

    # --- dispatcher sanity (tiny batch goes through the jnp path) -------------
    q_disp = jax.block_until_ready(
        network_forward(state_small, w1t, b1t, w2t, b2t, nb_action=nb_action))
    assert jnp.allclose(q_disp, reference(state_small), atol=1e-5)

    print("KERNEL_OK")
</pallas_src>

<mosaic_0001>
module attributes {stable_mosaic.version = 11 : i64} {
  func.func @_mlp_kernel(%arg0: i32, %arg1: memref<5x128xf32, #tpu.memory_space<vmem>>, %arg2: memref<32x5xf32, #tpu.memory_space<vmem>>, %arg3: memref<32x1xf32, #tpu.memory_space<vmem>>, %arg4: memref<8x32xf32, #tpu.memory_space<vmem>>, %arg5: memref<8x1xf32, #tpu.memory_space<vmem>>, %arg6: memref<8x128xf32, #tpu.memory_space<vmem>>) attributes {dimension_semantics = [#tpu.dimension_semantics<parallel>], iteration_bounds = array<i64: 1>, scalar_prefetch = 0 : i64, scratch_operands = 0 : i64, tpu.core_type = #tpu.core_type<tc>, window_params = [{transform_indices = @transform_0, window_bounds = array<i64: 5, 128>}, {pipeline_mode = #tpu.pipeline_mode<synchronous>, transform_indices = @transform_1, window_bounds = array<i64: 32, 5>}, {pipeline_mode = #tpu.pipeline_mode<synchronous>, transform_indices = @transform_2, window_bounds = array<i64: 32, 1>}, {pipeline_mode = #tpu.pipeline_mode<synchronous>, transform_indices = @transform_3, window_bounds = array<i64: 8, 32>}, {pipeline_mode = #tpu.pipeline_mode<synchronous>, transform_indices = @transform_4, window_bounds = array<i64: 8, 1>}, {transform_indices = @transform_5, window_bounds = array<i64: 8, 128>}]} {
    %c0 = arith.constant 0 : index
    %c0_0 = arith.constant 0 : index
    %0 = vector.load %arg2[%c0, %c0_0] : memref<32x5xf32, #tpu.memory_space<vmem>>, vector<32x5xf32>
    %c0_1 = arith.constant 0 : index
    %c0_2 = arith.constant 0 : index
    %1 = vector.load %arg1[%c0_1, %c0_2] : memref<5x128xf32, #tpu.memory_space<vmem>>, vector<5x128xf32>
    %cst = arith.constant dense<0.000000e+00> : vector<32x128xf32>
    %2 = tpu.matmul %0, %1, %cst {dimension_numbers = #tpu.dot_dimension_numbers<[1], [0], [0], [1], [0, 0, 1, 1], [], []>} : vector<32x5xf32>, vector<5x128xf32>, vector<32x128xf32> -> vector<32x128xf32>
    %c0_3 = arith.constant 0 : index
    %c0_4 = arith.constant 0 : index
    %3 = vector.load %arg3[%c0_3, %c0_4] : memref<32x1xf32, #tpu.memory_space<vmem>>, vector<32x1xf32>
    %4 = vector.broadcast %3 : vector<32x1xf32> to vector<32x128xf32>
    %5 = arith.addf %2, %4 : vector<32x128xf32>
    %cst_5 = arith.constant 0.000000e+00 : f32
    %6 = vector.broadcast %cst_5 : f32 to vector<32x128xf32>
    %7 = arith.maximumf %5, %6 : vector<32x128xf32>
    %c0_6 = arith.constant 0 : index
    %c0_7 = arith.constant 0 : index
    %8 = vector.load %arg4[%c0_6, %c0_7] : memref<8x32xf32, #tpu.memory_space<vmem>>, vector<8x32xf32>
    %cst_8 = arith.constant dense<0.000000e+00> : vector<8x128xf32>
    %9 = tpu.matmul %8, %7, %cst_8 {dimension_numbers = #tpu.dot_dimension_numbers<[1], [0], [0], [1], [0, 0, 1, 1], [], []>} : vector<8x32xf32>, vector<32x128xf32>, vector<8x128xf32> -> vector<8x128xf32>
    %c0_9 = arith.constant 0 : index
    %c0_10 = arith.constant 0 : index
    %10 = vector.load %arg5[%c0_9, %c0_10] : memref<8x1xf32, #tpu.memory_space<vmem>>, vector<8x1xf32>
    %11 = vector.broadcast %10 : vector<8x1xf32> to vector<8x128xf32>
    %12 = arith.addf %9, %11 : vector<8x128xf32>
    %c0_11 = arith.constant 0 : index
    %c0_12 = arith.constant 0 : index
    %13 = vector.load %arg6[%c0_11, %c0_12] : memref<8x128xf32, #tpu.memory_space<vmem>>, vector<8x128xf32>
    tpu.vector_store %arg6[%c0_11, %c0_12], %12 {strides = array<i32>} : memref<8x128xf32, #tpu.memory_space<vmem>>, vector<8x128xf32>,
    return
  }
  func.func @transform_0(%arg0: i32) -> (i32, i32) {
    %c0_i32 = arith.constant 0 : i32
    %c0_i32_0 = arith.constant 0 : i32
    return %c0_i32, %arg0 : i32, i32
  }
  func.func @transform_1(%arg0: i32) -> (i32, i32) {
    %c0_i32 = arith.constant 0 : i32
    %c0_i32_0 = arith.constant 0 : i32
    %c0_i32_1 = arith.constant 0 : i32
    return %c0_i32, %c0_i32_0 : i32, i32
  }
  func.func @transform_2(%arg0: i32) -> (i32, i32) {
    %c0_i32 = arith.constant 0 : i32
    %c0_i32_0 = arith.constant 0 : i32
    %c0_i32_1 = arith.constant 0 : i32
    return %c0_i32, %c0_i32_0 : i32, i32
  }
  func.func @transform_3(%arg0: i32) -> (i32, i32) {
    %c0_i32 = arith.constant 0 : i32
    %c0_i32_0 = arith.constant 0 : i32
    %c0_i32_1 = arith.constant 0 : i32
    return %c0_i32, %c0_i32_0 : i32, i32
  }
  func.func @transform_4(%arg0: i32) -> (i32, i32) {
    %c0_i32 = arith.constant 0 : i32
    %c0_i32_0 = arith.constant 0 : i32
    %c0_i32_1 = arith.constant 0 : i32
    return %c0_i32, %c0_i32_0 : i32, i32
  }
  func.func @transform_5(%arg0: i32) -> (i32, i32) {
    %c0_i32 = arith.constant 0 : i32
    %c0_i32_0 = arith.constant 0 : i32
    return %c0_i32, %arg0 : i32, i32
  }
}

</mosaic_0001>

<llo_original>
// kernel: network_forward_pallas.1
$region0: #{network_forward_pallas.1}
  #allocation0 [shape = 'u32[]', space=smem, size = 0x4, offset = 0x4, fixed_abs, tag = 'smem constant byte address 0x4 - core index']
  #allocation1 [shape = 'u32[144,128]{1,0:T(1,128)}', space=vmem, size = 0x12000, scoped, tag = 'internal scratch']
  %s0 = inlined_call_operand.vmem [shape: f32[5,128], index: 0, kind: input, shape index: {}]
  %s1 = inlined_call_operand.vmem [shape: f32[32,5], index: 1, kind: input, shape index: {}]
  %s2 = inlined_call_operand.vmem [shape: f32[32,1], index: 2, kind: input, shape index: {}]
  %s3 = inlined_call_operand.vmem [shape: f32[8,32], index: 3, kind: input, shape index: {}]
  %s4 = inlined_call_operand.vmem [shape: f32[8,1], index: 4, kind: input, shape index: {}]
  %s5 = inlined_call_operand.vmem [shape: f32[8,128], index: 5, kind: output, shape index: {}]
  %s6 = sld [smem:[#allocation0]]
  $region30: #{network_forward_pallas.1} parent=0
    _
  %s8 = ssub.s32 1, %s6
  %s9 = scalar_select 0, %s8, %s6
  // Predicated region
  $region2: #{network_forward_pallas.1} parent=0 // pred_check
    _
  $region3: #{network_forward_pallas.1} parent=0 // pred_check_branch
    %11 = sbr.rel (0) target = $region5
  $region4: #{network_forward_pallas.1} parent=0 // pred_region
    _
  $region5: #{network_forward_pallas.1} parent=0 // pred_fallthru
    _
  // Predicated region
  $region6: #{network_forward_pallas.1} parent=0 // pred_check
    _
  $region7: #{network_forward_pallas.1} parent=0 // pred_check_branch
    %13 = sbr.rel (0) target = $region9
  $region8: #{network_forward_pallas.1} parent=0 // pred_region
    _
  $region9: #{network_forward_pallas.1} parent=0 // pred_fallthru
    _
  // Predicated region
  $region10: #{network_forward_pallas.1} parent=0 // pred_check
    _
  $region11: #{network_forward_pallas.1} parent=0 // pred_check_branch
    %15 = sbr.rel (0) target = $region13
  $region12: #{network_forward_pallas.1} parent=0 // pred_region
    _
  $region13: #{network_forward_pallas.1} parent=0 // pred_fallthru
    _
  // Predicated region
  $region14: #{network_forward_pallas.1} parent=0 // pred_check
    _
  $region15: #{network_forward_pallas.1} parent=0 // pred_check_branch
    %17 = sbr.rel (0) target = $region17
  $region16: #{network_forward_pallas.1} parent=0 // pred_region
    _
  $region17: #{network_forward_pallas.1} parent=0 // pred_fallthru
    _
  // Predicated region
  $region18: #{network_forward_pallas.1} parent=0 // pred_check
    _
  $region19: #{network_forward_pallas.1} parent=0 // pred_check_branch
    %19 = sbr.rel (0) target = $region21
  $region20: #{network_forward_pallas.1} parent=0 // pred_region
    _
  $region21: #{network_forward_pallas.1} parent=0 // pred_fallthru
    _
  %v20 = vld [vmem:[%s1] sm:$0xff]
  %v21 = vld [vmem:[%s1 + $0x8] sm:$0xff]
  %v22 = vld [vmem:[%s1 + $0x10] sm:$0xff]
  %v23 = vld [vmem:[%s1 + $0x18] sm:$0xff]
  %v24 = vld [vmem:[%s0] sm:$0x1f]
  %v25 = vld [vmem:[%s2] sm:$0xff]
  %v26 = vld [vmem:[%s2 + $0x8] sm:$0xff]
  %v27 = vld [vmem:[%s2 + $0x10] sm:$0xff]
  %v28 = vld [vmem:[%s2 + $0x18] sm:$0xff]
  %30 = vset.pattern.permute.xlu0 0
  %31 = vperm.xlu0 %30, %v25
  %v32 = vpop.permute.xlu0 %31
  %35 = vset.pattern.permute.xlu0 0
  %36 = vperm.xlu0 %35, %v26
  %v37 = vpop.permute.xlu0 %36
  %40 = vset.pattern.permute.xlu0 0
  %41 = vperm.xlu0 %40, %v27
  %v42 = vpop.permute.xlu0 %41
  %45 = vset.pattern.permute.xlu0 0
  %46 = vperm.xlu0 %45, %v28
  %v47 = vpop.permute.xlu0 %46
  %vm49 = vcmask 39936
  %v51 = vsel %vm49, %v20, 0
  %v54 = vsel %vm49, %v21, 0
  %v57 = vsel %vm49, %v22, 0
  %v60 = vsel %vm49, %v23, 0
  %vm62 = vcmask 1044480
  %v64 = vsel %vm62, %v24, 0
  %66 = vmatprep.subr.mxu0 0.0
  %67 = vmatpush1.msra.mxu0 %v64
  %68 = vmatprep.subr.mxu0 0.0
  %69 = vmatpush1.msra.mxu0 0.0
  %70 = vmatprep.subr.mxu0 0.0
  %71 = vmatpush1.msra.mxu0 0.0
  %72 = vmatprep.subr.mxu0 0.0
  %73 = vmatpush1.msra.mxu0 0.0
  %74 = vmatprep.subr.mxu0 0.0
  %75 = vmatpush1.msra.mxu0 0.0
  %76 = vmatprep.subr.mxu0 0.0
  %77 = vmatpush1.msra.mxu0 0.0
  %78 = vmatprep.subr.mxu0 0.0
  %79 = vmatpush1.msra.mxu0 0.0
  %80 = vmatprep.subr.mxu0 0.0
  %81 = vmatpush1.msra.mxu0 0.0
  %82 = vmatprep.subr.mxu0 0.0
  %83 = vmatpush1.msra.mxu0 0.0
  %84 = vmatprep.subr.mxu0 0.0
  %85 = vmatpush1.msra.mxu0 0.0
  %86 = vmatprep.subr.mxu0 0.0
  %87 = vmatpush1.msra.mxu0 0.0
  %88 = vmatprep.subr.mxu0 0.0
  %89 = vmatpush1.msra.mxu0 0.0
  %90 = vmatprep.subr.mxu0 0.0
  %91 = vmatpush1.msra.mxu0 0.0
  %92 = vmatprep.subr.mxu0 0.0
  %93 = vmatpush1.msra.mxu0 0.0
  %94 = vmatprep.subr.mxu0 0.0
  %95 = vmatpush1.msra.mxu0 0.0
  %96 = vmatprep.subr.mxu0 0.0
  %97 = vmatpush1.msra.mxu0 0.0
  %98 = vmatprep.subr.mxu0 0.0
  %99 = vmatpush1.msra.mxu0 0.0
  %100 = vmatprep.subr.mxu0 0.0
  %101 = vmatpush1.msra.mxu0 0.0
  %102 = vmatprep.subr.mxu0 0.0
  %103 = vmatpush1.msra.mxu0 0.0
  %104 = vmatprep.subr.mxu0 0.0
  %105 = vmatpush1.msra.mxu0 0.0
  %106 = vmatprep.subr.mxu0 0.0
  %107 = vmatpush1.msra.mxu0 0.0
  %108 = vmatprep.subr.mxu0 0.0
  %109 = vmatpush1.msra.mxu0 0.0
  %110 = vmatprep.subr.mxu0 0.0
  %111 = vmatpush1.msra.mxu0 0.0
  %112 = vmatprep.subr.mxu0 0.0
  %113 = vmatpush1.msra.mxu0 0.0
  %114 = vmatprep.subr.mxu0 0.0
  %115 = vmatpush1.msra.mxu0 0.0
  %116 = vmatprep.subr.mxu0 0.0
  %117 = vmatpush1.msra.mxu0 0.0
  %118 = vmatprep.subr.mxu0 0.0
  %119 = vmatpush1.msra.mxu0 0.0
  %120 = vmatprep.subr.mxu0 0.0
  %121 = vmatpush1.msra.mxu0 0.0
  %122 = vmatprep.subr.mxu0 0.0
  %123 = vmatpush1.msra.mxu0 0.0
  %124 = vmatprep.subr.mxu0 0.0
  %125 = vmatpush1.msra.mxu0 0.0
  %126 = vmatprep.subr.mxu0 0.0
  %127 = vmatpush1.msra.mxu0 0.0
  %128 = vmatprep.subr.mxu0 0.0
  %129 = vmatpush1.msra.mxu0 0.0
  %130 = vmatprep.mubr.f32.mxu0 0.0
  %131 = vmatmul.mubr.f32.gmra.mrb[0].mxu0 %v51
  %v132 = vpop.f32.mrb[0].mxu0
  %v133 = vadd.f32 %v32, %v132
  %v134 = vpop.f32.mrb[0].mxu0
  %135 = vmatprep.mubr.f32.mxu0 0.0
  %136 = vmatmul.mubr.f32.gmra.mrb[0].mxu0 %v54
  %v137 = vpop.f32.mrb[0].mxu0
  %v138 = vadd.f32 %v37, %v137
  %v139 = vpop.f32.mrb[0].mxu0
  %140 = vmatprep.mubr.f32.mxu0 0.0
  %141 = vmatmul.mubr.f32.gmra.mrb[0].mxu0 %v57
  %v142 = vpop.f32.mrb[0].mxu0
  %v143 = vadd.f32 %v42, %v142
  %v144 = vpop.f32.mrb[0].mxu0
  %145 = vmatprep.mubr.f32.mxu0 0.0
  %146 = vmatmul.mubr.f32.gmra.mrb[0].mxu0 %v60
  %v147 = vpop.f32.mrb[0].mxu0
  %v148 = vadd.f32 %v47, %v147
  %v149 = vpop.f32.mrb[0].mxu0
  %150 = vdwg.mxu0
  %v151 = vmax.f32 %v133, 0.0
  %v152 = vmax.f32 %v138, 0.0
  %v153 = vmax.f32 %v143, 0.0
  %v154 = vmax.f32 %v148, 0.0
  %v155 = vld [vmem:[%s3] sm:$0xff]
  %v156 = vld [vmem:[%s4] sm:$0xff]
  %158 = vset.pattern.permute.xlu0 0
  %159 = vperm.xlu0 %158, %v156
  %v160 = vpop.permute.xlu0 %159
  %vm162 = vcmask 261120
  %v164 = vsel %vm162, %v155, 0
  %166 = vmatprep.subr.mxu0 0.0
  %167 = vmatpush1.msra.mxu0 %v151
  %168 = vmatprep.subr.mxu0 0.0
  %169 = vmatpush1.msra.mxu0 %v152
  %170 = vmatprep.subr.mxu0 0.0
  %171 = vmatpush1.msra.mxu0 %v153
  %172 = vmatprep.subr.mxu0 0.0
  %173 = vmatpush1.msra.mxu0 %v154
  %174 = vmatprep.subr.mxu0 0.0
  %175 = vmatpush1.msra.mxu0 0.0
  %176 = vmatprep.subr.mxu0 0.0
  %177 = vmatpush1.msra.mxu0 0.0
  %178 = vmatprep.subr.mxu0 0.0
  %179 = vmatpush1.msra.mxu0 0.0
  %180 = vmatprep.subr.mxu0 0.0
  %181 = vmatpush1.msra.mxu0 0.0
  %182 = vmatprep.subr.mxu0 0.0
  %183 = vmatpush1.msra.mxu0 0.0
  %184 = vmatprep.subr.mxu0 0.0
  %185 = vmatpush1.msra.mxu0 0.0
  %186 = vmatprep.subr.mxu0 0.0
  %187 = vmatpush1.msra.mxu0 0.0
  %188 = vmatprep.subr.mxu0 0.0
  %189 = vmatpush1.msra.mxu0 0.0
  %190 = vmatprep.subr.mxu0 0.0
  %191 = vmatpush1.msra.mxu0 0.0
  %192 = vmatprep.subr.mxu0 0.0
  %193 = vmatpush1.msra.mxu0 0.0
  %194 = vmatprep.subr.mxu0 0.0
  %195 = vmatpush1.msra.mxu0 0.0
  %196 = vmatprep.subr.mxu0 0.0
  %197 = vmatpush1.msra.mxu0 0.0
  %198 = vmatprep.subr.mxu0 0.0
  %199 = vmatpush1.msra.mxu0 0.0
  %200 = vmatprep.subr.mxu0 0.0
  %201 = vmatpush1.msra.mxu0 0.0
  %202 = vmatprep.subr.mxu0 0.0
  %203 = vmatpush1.msra.mxu0 0.0
  %204 = vmatprep.subr.mxu0 0.0
  %205 = vmatpush1.msra.mxu0 0.0
  %206 = vmatprep.subr.mxu0 0.0
  %207 = vmatpush1.msra.mxu0 0.0
  %208 = vmatprep.subr.mxu0 0.0
  %209 = vmatpush1.msra.mxu0 0.0
  %210 = vmatprep.subr.mxu0 0.0
  %211 = vmatpush1.msra.mxu0 0.0
  %212 = vmatprep.subr.mxu0 0.0
  %213 = vmatpush1.msra.mxu0 0.0
  %214 = vmatprep.subr.mxu0 0.0
  %215 = vmatpush1.msra.mxu0 0.0
  %216 = vmatprep.subr.mxu0 0.0
  %217 = vmatpush1.msra.mxu0 0.0
  %218 = vmatprep.subr.mxu0 0.0
  %219 = vmatpush1.msra.mxu0 0.0
  %220 = vmatprep.subr.mxu0 0.0
  %221 = vmatpush1.msra.mxu0 0.0
  %222 = vmatprep.subr.mxu0 0.0
  %223 = vmatpush1.msra.mxu0 0.0
  %224 = vmatprep.subr.mxu0 0.0
  %225 = vmatpush1.msra.mxu0 0.0
  %226 = vmatprep.subr.mxu0 0.0
  %227 = vmatpush1.msra.mxu0 0.0
  %228 = vmatprep.subr.mxu0 0.0
  %229 = vmatpush1.msra.mxu0 0.0
  %230 = vmatprep.mubr.f32.mxu0 0.0
  %231 = vmatmul.mubr.f32.gmra.mrb[0].mxu0 %v164
  %v232 = vpop.f32.mrb[0].mxu0
  %v233 = vadd.f32 %v160, %v232
  %v234 = vpop.f32.mrb[0].mxu0
  %235 = vdwg.mxu0
  %236 = vst [vmem:[%s5] sm:$0xff] %v233
  // Predicated region
  $region22: #{network_forward_pallas.1} parent=0 // pred_check
    _
  $region23: #{network_forward_pallas.1} parent=0 // pred_check_branch
    %238 = sbr.rel (0) target = $region25
  $region24: #{network_forward_pallas.1} parent=0 // pred_region
    _
  $region25: #{network_forward_pallas.1} parent=0 // pred_fallthru
    _
  // Predicated region
  $region26: #{network_forward_pallas.1} parent=0 // pred_check
    _
  $region27: #{network_forward_pallas.1} parent=0 // pred_check_branch
    %240 = sbr.rel (0) target = $region29
  $region28: #{network_forward_pallas.1} parent=0 // pred_region
    _
  $region29: #{network_forward_pallas.1} parent=0 // pred_fallthru
    _

</llo_original>
